<compile_context>
chip_gen: v7x
topology: tpu7x:2x2x1
jax: 0.10.0
libtpu: 0.0.40
codegen_flags: <defaults>
</compile_context>

<pallas_src>
import functools
import math

import jax
import jax.numpy as jnp
from jax.experimental import pallas as pl
from jax.experimental.pallas import tpu as pltpu

CH = 1024          # hidden width, fixed in the PyTorch module
_LANE = 128        # lane width
_SUBLANE = 8       # sublane height


def _round_up(n, m):
    return ((n + m - 1) // m) * m


def _pose_regressor_kernel(x_ref, w1_ref, b1_ref, w2_ref, b2_ref, o_ref):
    x = x_ref[...]                                   # (tb, Dp)
    # fc_h (or fc_h_prior): (tb, Dp) @ (Dp, CH) + (1, CH); f32 accumulation.
    h = jnp.dot(x, w1_ref[...], preferred_element_type=jnp.float32) + b1_ref[...]
    # exact (erf-based) GELU, matching torch.nn.functional.gelu default.
    h = 0.5 * h * (1.0 + jax.lax.erf(h * (1.0 / math.sqrt(2.0))))
    # fc_o: (tb, CH) @ (CH, Op) + (1, Op); cast h to operand dtype for the MXU.
    o = jnp.dot(h.astype(w2_ref.dtype), w2_ref[...],
                preferred_element_type=jnp.float32) + b2_ref[...]
    o_ref[...] = o.astype(o_ref.dtype)


def _pick_batch_tile(B):
    """Return (tile_rows, padded_batch). Whole batch if <= 256 rows (grid of 1),
    else 256-row tiles -> >= 2 grid steps so both v7x TCs are used."""
    Bp = _round_up(B, _SUBLANE)
    if Bp <= 256:
        return Bp, Bp
    tb = 256
    return tb, _round_up(Bp, tb)


@functools.partial(jax.jit, static_argnames=("use_bf16",))
def pose_regressor(x, w1, b1, w2, b2, *, use_bf16=False):
    """x: (B, D_in) where D_in = decoder_dim (or 2*decoder_dim when use_prior)."""
    B, D = x.shape
    O = w2.shape[1]

    # Wrapper-side padding: lane-dense K and N, sublane-aligned batch.
    Dp = _round_up(D, _LANE)
    Op = _round_up(O, _LANE)
    tb, Bp = _pick_batch_tile(B)

    x_p = jnp.pad(x, ((0, Bp - B), (0, Dp - D)))
    w1_p = jnp.pad(w1, ((0, Dp - D), (0, 0)))
    b1_p = b1
    w2_p = jnp.pad(w2, ((0, 0), (0, Op - O)))
    b2_p = jnp.pad(b2, ((0, 0), (0, Op - O)))

    if use_bf16:
        # bf16 operands for the MXU (v6e/v7x fast path); accumulation, bias
        # add and GELU stay f32 inside the kernel.
        x_p = x_p.astype(jnp.bfloat16)
        w1_p = w1_p.astype(jnp.bfloat16)
        w2_p = w2_p.astype(jnp.bfloat16)

    grid = (Bp // tb,)

    # VMEM budget: x/out double-buffered, weights single-buffered, + h slab.
    isz = jnp.dtype(x_p.dtype).itemsize
    wsz = jnp.dtype(w1_p.dtype).itemsize
    vmem_est = (2 * tb * Dp * isz                 # x tile (double-buffered)
                + Dp * CH * wsz + CH * 4          # W1 + b1 (single-buffered)
                + CH * Op * wsz + Op * 4          # W2 + b2 (single-buffered)
                + 2 * tb * Op * 4                 # out tile (double-buffered)
                + 2 * tb * CH * 4)                # hidden slab headroom
    vmem_limit = int(min(64 * 2**20, max(32 * 2**20, int(1.5 * vmem_est))))

    out_p = pl.pallas_call(
        _pose_regressor_kernel,
        out_shape=jax.ShapeDtypeStruct((Bp, Op), x.dtype),
        grid_spec=pltpu.PrefetchScalarGridSpec(
            num_scalar_prefetch=0,
            grid=grid,
            in_specs=[
                pl.BlockSpec((tb, Dp), lambda i: (i, 0)),                 # x tile
                pl.BlockSpec((Dp, CH), lambda i: (0, 0),
                             pipeline_mode=pl.Buffered(1)),               # W1 (resident)
                pl.BlockSpec((1, CH), lambda i: (0, 0),
                             pipeline_mode=pl.Buffered(1)),               # b1
                pl.BlockSpec((CH, Op), lambda i: (0, 0),
                             pipeline_mode=pl.Buffered(1)),               # W2 (resident)
                pl.BlockSpec((1, Op), lambda i: (0, 0),
                             pipeline_mode=pl.Buffered(1)),               # b2
            ],
            out_specs=pl.BlockSpec((tb, Op), lambda i: (i, 0)),
        ),
        compiler_params=pltpu.CompilerParams(
            dimension_semantics=("parallel",),
            vmem_limit_bytes=vmem_limit),
    )(x_p, w1_p, b1_p, w2_p, b2_p)

    return out_p[:B, :O]


def init_pose_regressor_params(key, decoder_dim, output_dim, use_prior=False,
                               dtype=jnp.float32):
    """Deterministic synthetic params. Weights: xavier_uniform (matches
    _reset_parameters); biases: PyTorch Linear default uniform(-1/sqrt(fan_in), ...)."""
    in_dim = decoder_dim * 2 if use_prior else decoder_dim
    k1, k2, k3, k4 = jax.random.split(key, 4)

    def xavier(k, fan_in, fan_out):
        bound = math.sqrt(6.0 / (fan_in + fan_out))
        return jax.random.uniform(k, (fan_in, fan_out), dtype, -bound, bound)

    def bias(k, fan_in, fan_out):
        bound = 1.0 / math.sqrt(fan_in)
        return jax.random.uniform(k, (1, fan_out), dtype, -bound, bound)

    w1 = xavier(k1, in_dim, CH)
    b1 = bias(k2, in_dim, CH)
    w2 = xavier(k3, CH, output_dim)
    b2 = bias(k4, CH, output_dim)
    return w1, b1, w2, b2


def _reference(x, w1, b1, w2, b2):
    h = jax.nn.gelu(x @ w1 + b1, approximate=False)
    return h @ w2 + b2


if __name__ == "__main__":
    key = jax.random.PRNGKey(0)
    kx, kx2, kp, kp2 = jax.random.split(key, 4)

    decoder_dim = 32
    output_dim = 4  # e.g. quaternion pose component

    # --- small case, use_prior=False (single grid step) ---
    batch = 8
    x = jax.random.normal(kx, (batch, decoder_dim), jnp.float32)
    w1, b1, w2, b2 = init_pose_regressor_params(
        kp, decoder_dim, output_dim, use_prior=False)
    y = pose_regressor(x, w1, b1, w2, b2)
    jax.block_until_ready(y)
    y_ref = _reference(x, w1, b1, w2, b2)
    assert y.shape == (batch, output_dim)
    assert jnp.allclose(y, y_ref, atol=1e-5, rtol=1e-5), "mismatch (use_prior=False)"

    # --- use_prior=True path (input dim = 2*decoder_dim), larger batch that
    #     exercises 256-row tiling, batch padding, and >=2 grid steps ---
    batch2 = 272
    x2 = jax.random.normal(kx2, (batch2, 2 * decoder_dim), jnp.float32)
    w1p, b1p, w2p, b2p = init_pose_regressor_params(
        kp2, decoder_dim, output_dim, use_prior=True)
    y2 = pose_regressor(x2, w1p, b1p, w2p, b2p)
    jax.block_until_ready(y2)
    y2_ref = _reference(x2, w1p, b1p, w2p, b2p)
    assert y2.shape == (batch2, output_dim)
    assert jnp.allclose(y2, y2_ref, atol=1e-4, rtol=1e-5), "mismatch (use_prior=True)"

    print("KERNEL_OK")
</pallas_src>

<mosaic_0001>
module attributes {stable_mosaic.version = 11 : i64} {
  func.func @_pose_regressor_kernel(%arg0: i32, %arg1: memref<8x128xf32, #tpu.memory_space<vmem>>, %arg2: memref<128x1024xf32, #tpu.memory_space<vmem>>, %arg3: memref<1x1024xf32, #tpu.memory_space<vmem>>, %arg4: memref<1024x128xf32, #tpu.memory_space<vmem>>, %arg5: memref<1x128xf32, #tpu.memory_space<vmem>>, %arg6: memref<8x128xf32, #tpu.memory_space<vmem>>) attributes {dimension_semantics = [#tpu.dimension_semantics<parallel>], iteration_bounds = array<i64: 1>, scalar_prefetch = 0 : i64, scratch_operands = 0 : i64, tpu.core_type = #tpu.core_type<tc>, window_params = [{transform_indices = @transform_0, window_bounds = array<i64: 8, 128>}, {pipeline_mode = #tpu.pipeline_mode<synchronous>, transform_indices = @transform_1, window_bounds = array<i64: 128, 1024>}, {pipeline_mode = #tpu.pipeline_mode<synchronous>, transform_indices = @transform_2, window_bounds = array<i64: 1, 1024>}, {pipeline_mode = #tpu.pipeline_mode<synchronous>, transform_indices = @transform_3, window_bounds = array<i64: 1024, 128>}, {pipeline_mode = #tpu.pipeline_mode<synchronous>, transform_indices = @transform_4, window_bounds = array<i64: 1, 128>}, {transform_indices = @transform_5, window_bounds = array<i64: 8, 128>}]} {
    %c0 = arith.constant 0 : index
    %c0_0 = arith.constant 0 : index
    %0 = vector.load %arg1[%c0, %c0_0] : memref<8x128xf32, #tpu.memory_space<vmem>>, vector<8x128xf32>
    %c0_1 = arith.constant 0 : index
    %c0_2 = arith.constant 0 : index
    %1 = vector.load %arg2[%c0_1, %c0_2] : memref<128x1024xf32, #tpu.memory_space<vmem>>, vector<128x1024xf32>
    %cst = arith.constant dense<0.000000e+00> : vector<8x1024xf32>
    %2 = tpu.matmul %0, %1, %cst {dimension_numbers = #tpu.dot_dimension_numbers<[1], [0], [0], [1], [0, 0, 1, 1], [], []>} : vector<8x128xf32>, vector<128x1024xf32>, vector<8x1024xf32> -> vector<8x1024xf32>
    %c0_3 = arith.constant 0 : index
    %c0_4 = arith.constant 0 : index
    %3 = vector.load %arg3[%c0_3, %c0_4] : memref<1x1024xf32, #tpu.memory_space<vmem>>, vector<1x1024xf32>
    %4 = vector.broadcast %3 : vector<1x1024xf32> to vector<8x1024xf32>
    %5 = arith.addf %2, %4 : vector<8x1024xf32>
    %cst_5 = arith.constant 5.000000e-01 : f32
    %6 = vector.broadcast %cst_5 : f32 to vector<8x1024xf32>
    %7 = arith.mulf %6, %5 : vector<8x1024xf32>
    %cst_6 = arith.constant 0.707106769 : f32
    %8 = vector.broadcast %cst_6 : f32 to vector<8x1024xf32>
    %9 = arith.mulf %5, %8 : vector<8x1024xf32>
    %10 = math.erf %9 : vector<8x1024xf32>
    %cst_7 = arith.constant 1.000000e+00 : f32
    %11 = vector.broadcast %cst_7 : f32 to vector<8x1024xf32>
    %12 = arith.addf %11, %10 : vector<8x1024xf32>
    %13 = arith.mulf %7, %12 : vector<8x1024xf32>
    %c0_8 = arith.constant 0 : index
    %c0_9 = arith.constant 0 : index
    %14 = vector.load %arg4[%c0_8, %c0_9] : memref<1024x128xf32, #tpu.memory_space<vmem>>, vector<1024x128xf32>
    %cst_10 = arith.constant dense<0.000000e+00> : vector<8x128xf32>
    %15 = tpu.matmul %13, %14, %cst_10 {dimension_numbers = #tpu.dot_dimension_numbers<[1], [0], [0], [1], [0, 0, 1, 1], [], []>} : vector<8x1024xf32>, vector<1024x128xf32>, vector<8x128xf32> -> vector<8x128xf32>
    %c0_11 = arith.constant 0 : index
    %c0_12 = arith.constant 0 : index
    %16 = vector.load %arg5[%c0_11, %c0_12] : memref<1x128xf32, #tpu.memory_space<vmem>>, vector<1x128xf32>
    %17 = vector.broadcast %16 : vector<1x128xf32> to vector<8x128xf32>
    %18 = arith.addf %15, %17 : vector<8x128xf32>
    %c0_13 = arith.constant 0 : index
    %c0_14 = arith.constant 0 : index
    %19 = vector.load %arg6[%c0_13, %c0_14] : memref<8x128xf32, #tpu.memory_space<vmem>>, vector<8x128xf32>
    tpu.vector_store %arg6[%c0_13, %c0_14], %18 {strides = array<i32>} : memref<8x128xf32, #tpu.memory_space<vmem>>, vector<8x128xf32>,
    return
  }
  func.func @transform_0(%arg0: i32) -> (i32, i32) {
    %c0_i32 = arith.constant 0 : i32
    %c0_i32_0 = arith.constant 0 : i32
    return %arg0, %c0_i32 : i32, i32
  }
  func.func @transform_1(%arg0: i32) -> (i32, i32) {
    %c0_i32 = arith.constant 0 : i32
    %c0_i32_0 = arith.constant 0 : i32
    %c0_i32_1 = arith.constant 0 : i32
    return %c0_i32, %c0_i32_0 : i32, i32
  }
  func.func @transform_2(%arg0: i32) -> (i32, i32) {
    %c0_i32 = arith.constant 0 : i32
    %c0_i32_0 = arith.constant 0 : i32
    %c0_i32_1 = arith.constant 0 : i32
    return %c0_i32, %c0_i32_0 : i32, i32
  }
  func.func @transform_3(%arg0: i32) -> (i32, i32) {
    %c0_i32 = arith.constant 0 : i32
    %c0_i32_0 = arith.constant 0 : i32
    %c0_i32_1 = arith.constant 0 : i32
    return %c0_i32, %c0_i32_0 : i32, i32
  }
  func.func @transform_4(%arg0: i32) -> (i32, i32) {
    %c0_i32 = arith.constant 0 : i32
    %c0_i32_0 = arith.constant 0 : i32
    %c0_i32_1 = arith.constant 0 : i32
    return %c0_i32, %c0_i32_0 : i32, i32
  }
  func.func @transform_5(%arg0: i32) -> (i32, i32) {
    %c0_i32 = arith.constant 0 : i32
    %c0_i32_0 = arith.constant 0 : i32
    return %arg0, %c0_i32 : i32, i32
  }
}

</mosaic_0001>

<llo_original>
// kernel: pose_regressor.1
$region0: #{pose_regressor.1}
  #allocation0 [shape = 'u32[]', space=smem, size = 0x4, offset = 0x4, fixed_abs, tag = 'smem constant byte address 0x4 - core index']
  #allocation1 [shape = 'u32[144,128]{1,0:T(1,128)}', space=vmem, size = 0x12000, scoped, tag = 'internal scratch']
  %s0 = inlined_call_operand.vmem [shape: f32[8,128], index: 0, kind: input, shape index: {}]
  %s1 = inlined_call_operand.vmem [shape: f32[128,1024], index: 1, kind: input, shape index: {}]
  %s2 = inlined_call_operand.vmem [shape: f32[1,1024], index: 2, kind: input, shape index: {}]
  %s3 = inlined_call_operand.vmem [shape: f32[1024,128], index: 3, kind: input, shape index: {}]
  %s4 = inlined_call_operand.vmem [shape: f32[1,128], index: 4, kind: input, shape index: {}]
  %s5 = inlined_call_operand.vmem [shape: f32[8,128], index: 5, kind: output, shape index: {}]
  %s6 = sld [smem:[#allocation0]]
  $region30: #{pose_regressor.1} parent=0
    _
  %s8 = ssub.s32 1, %s6
  %s9 = scalar_select 0, %s8, %s6
  // Predicated region
  $region2: #{pose_regressor.1} parent=0 // pred_check
    _
  $region3: #{pose_regressor.1} parent=0 // pred_check_branch
    %11 = sbr.rel (0) target = $region5
  $region4: #{pose_regressor.1} parent=0 // pred_region
    _
  $region5: #{pose_regressor.1} parent=0 // pred_fallthru
    _
  // Predicated region
  $region6: #{pose_regressor.1} parent=0 // pred_check
    _
  $region7: #{pose_regressor.1} parent=0 // pred_check_branch
    %13 = sbr.rel (0) target = $region9
  $region8: #{pose_regressor.1} parent=0 // pred_region
    _
  $region9: #{pose_regressor.1} parent=0 // pred_fallthru
    _
  // Predicated region
  $region10: #{pose_regressor.1} parent=0 // pred_check
    _
  $region11: #{pose_regressor.1} parent=0 // pred_check_branch
    %15 = sbr.rel (0) target = $region13
  $region12: #{pose_regressor.1} parent=0 // pred_region
    _
  $region13: #{pose_regressor.1} parent=0 // pred_fallthru
    _
  // Predicated region
  $region14: #{pose_regressor.1} parent=0 // pred_check
    _
  $region15: #{pose_regressor.1} parent=0 // pred_check_branch
    %17 = sbr.rel (0) target = $region17
  $region16: #{pose_regressor.1} parent=0 // pred_region
    _
  $region17: #{pose_regressor.1} parent=0 // pred_fallthru
    _
  // Predicated region
  $region18: #{pose_regressor.1} parent=0 // pred_check
    _
  $region19: #{pose_regressor.1} parent=0 // pred_check_branch
    %19 = sbr.rel (0) target = $region21
  $region20: #{pose_regressor.1} parent=0 // pred_region
    _
  $region21: #{pose_regressor.1} parent=0 // pred_fallthru
    _
  %v20 = vld [vmem:[%s0] sm:$0xff]
  %v21 = vld [vmem:[%s1] sm:$0xff]
  %v22 = vld [vmem:[%s1 + $0x8] sm:$0xff]
  %v23 = vld [vmem:[%s1 + $0x10] sm:$0xff]
  %v24 = vld [vmem:[%s1 + $0x18] sm:$0xff]
  %v25 = vld [vmem:[%s1 + $0x20] sm:$0xff]
  %v26 = vld [vmem:[%s1 + $0x28] sm:$0xff]
  %v27 = vld [vmem:[%s1 + $0x30] sm:$0xff]
  %v28 = vld [vmem:[%s1 + $0x38] sm:$0xff]
  %v29 = vld [vmem:[%s1 + $0x40] sm:$0xff]
  %v30 = vld [vmem:[%s1 + $0x48] sm:$0xff]
  %v31 = vld [vmem:[%s1 + $0x50] sm:$0xff]
  %v32 = vld [vmem:[%s1 + $0x58] sm:$0xff]
  %v33 = vld [vmem:[%s1 + $0x60] sm:$0xff]
  %v34 = vld [vmem:[%s1 + $0x68] sm:$0xff]
  %v35 = vld [vmem:[%s1 + $0x70] sm:$0xff]
  %v36 = vld [vmem:[%s1 + $0x78] sm:$0xff]
  %v37 = vld [vmem:[%s1 + $0x80] sm:$0xff]
  %v38 = vld [vmem:[%s1 + $0x88] sm:$0xff]
  %v39 = vld [vmem:[%s1 + $0x90] sm:$0xff]
  %v40 = vld [vmem:[%s1 + $0x98] sm:$0xff]
  %v41 = vld [vmem:[%s1 + $0xa0] sm:$0xff]
  %v42 = vld [vmem:[%s1 + $0xa8] sm:$0xff]
  %v43 = vld [vmem:[%s1 + $0xb0] sm:$0xff]
  %v44 = vld [vmem:[%s1 + $0xb8] sm:$0xff]
  %v45 = vld [vmem:[%s1 + $0xc0] sm:$0xff]
  %v46 = vld [vmem:[%s1 + $0xc8] sm:$0xff]
  %v47 = vld [vmem:[%s1 + $0xd0] sm:$0xff]
  %v48 = vld [vmem:[%s1 + $0xd8] sm:$0xff]
  %v49 = vld [vmem:[%s1 + $0xe0] sm:$0xff]
  %v50 = vld [vmem:[%s1 + $0xe8] sm:$0xff]
  %v51 = vld [vmem:[%s1 + $0xf0] sm:$0xff]
  %v52 = vld [vmem:[%s1 + $0xf8] sm:$0xff]
  %v53 = vld [vmem:[%s1 + $0x100] sm:$0xff]
  %v54 = vld [vmem:[%s1 + $0x108] sm:$0xff]
  %v55 = vld [vmem:[%s1 + $0x110] sm:$0xff]
  %v56 = vld [vmem:[%s1 + $0x118] sm:$0xff]
  %v57 = vld [vmem:[%s1 + $0x120] sm:$0xff]
  %v58 = vld [vmem:[%s1 + $0x128] sm:$0xff]
  %v59 = vld [vmem:[%s1 + $0x130] sm:$0xff]
  %v60 = vld [vmem:[%s1 + $0x138] sm:$0xff]
  %v61 = vld [vmem:[%s1 + $0x140] sm:$0xff]
  %v62 = vld [vmem:[%s1 + $0x148] sm:$0xff]
  %v63 = vld [vmem:[%s1 + $0x150] sm:$0xff]
  %v64 = vld [vmem:[%s1 + $0x158] sm:$0xff]
  %v65 = vld [vmem:[%s1 + $0x160] sm:$0xff]
  %v66 = vld [vmem:[%s1 + $0x168] sm:$0xff]
  %v67 = vld [vmem:[%s1 + $0x170] sm:$0xff]
  %v68 = vld [vmem:[%s1 + $0x178] sm:$0xff]
  %v69 = vld [vmem:[%s1 + $0x180] sm:$0xff]
  %v70 = vld [vmem:[%s1 + $0x188] sm:$0xff]
  %v71 = vld [vmem:[%s1 + $0x190] sm:$0xff]
  %v72 = vld [vmem:[%s1 + $0x198] sm:$0xff]
  %v73 = vld [vmem:[%s1 + $0x1a0] sm:$0xff]
  %v74 = vld [vmem:[%s1 + $0x1a8] sm:$0xff]
  %v75 = vld [vmem:[%s1 + $0x1b0] sm:$0xff]
  %v76 = vld [vmem:[%s1 + $0x1b8] sm:$0xff]
  %v77 = vld [vmem:[%s1 + $0x1c0] sm:$0xff]
  %v78 = vld [vmem:[%s1 + $0x1c8] sm:$0xff]
  %v79 = vld [vmem:[%s1 + $0x1d0] sm:$0xff]
  %v80 = vld [vmem:[%s1 + $0x1d8] sm:$0xff]
  %v81 = vld [vmem:[%s1 + $0x1e0] sm:$0xff]
  %v82 = vld [vmem:[%s1 + $0x1e8] sm:$0xff]
  %v83 = vld [vmem:[%s1 + $0x1f0] sm:$0xff]
  %v84 = vld [vmem:[%s1 + $0x1f8] sm:$0xff]
  %v85 = vld [vmem:[%s1 + $0x200] sm:$0xff]
  %v86 = vld [vmem:[%s1 + $0x208] sm:$0xff]
  %v87 = vld [vmem:[%s1 + $0x210] sm:$0xff]
  %v88 = vld [vmem:[%s1 + $0x218] sm:$0xff]
  %v89 = vld [vmem:[%s1 + $0x220] sm:$0xff]
  %v90 = vld [vmem:[%s1 + $0x228] sm:$0xff]
  %v91 = vld [vmem:[%s1 + $0x230] sm:$0xff]
  %v92 = vld [vmem:[%s1 + $0x238] sm:$0xff]
  %v93 = vld [vmem:[%s1 + $0x240] sm:$0xff]
  %v94 = vld [vmem:[%s1 + $0x248] sm:$0xff]
  %v95 = vld [vmem:[%s1 + $0x250] sm:$0xff]
  %v96 = vld [vmem:[%s1 + $0x258] sm:$0xff]
  %v97 = vld [vmem:[%s1 + $0x260] sm:$0xff]
  %v98 = vld [vmem:[%s1 + $0x268] sm:$0xff]
  %v99 = vld [vmem:[%s1 + $0x270] sm:$0xff]
  %v100 = vld [vmem:[%s1 + $0x278] sm:$0xff]
  %v101 = vld [vmem:[%s1 + $0x280] sm:$0xff]
  %v102 = vld [vmem:[%s1 + $0x288] sm:$0xff]
  %v103 = vld [vmem:[%s1 + $0x290] sm:$0xff]
  %v104 = vld [vmem:[%s1 + $0x298] sm:$0xff]
  %v105 = vld [vmem:[%s1 + $0x2a0] sm:$0xff]
  %v106 = vld [vmem:[%s1 + $0x2a8] sm:$0xff]
  %v107 = vld [vmem:[%s1 + $0x2b0] sm:$0xff]
  %v108 = vld [vmem:[%s1 + $0x2b8] sm:$0xff]
  %v109 = vld [vmem:[%s1 + $0x2c0] sm:$0xff]
  %v110 = vld [vmem:[%s1 + $0x2c8] sm:$0xff]
  %v111 = vld [vmem:[%s1 + $0x2d0] sm:$0xff]
  %v112 = vld [vmem:[%s1 + $0x2d8] sm:$0xff]
  %v113 = vld [vmem:[%s1 + $0x2e0] sm:$0xff]
  %v114 = vld [vmem:[%s1 + $0x2e8] sm:$0xff]
  %v115 = vld [vmem:[%s1 + $0x2f0] sm:$0xff]
  %v116 = vld [vmem:[%s1 + $0x2f8] sm:$0xff]
  %v117 = vld [vmem:[%s1 + $0x300] sm:$0xff]
  %v118 = vld [vmem:[%s1 + $0x308] sm:$0xff]
  %v119 = vld [vmem:[%s1 + $0x310] sm:$0xff]
  %v120 = vld [vmem:[%s1 + $0x318] sm:$0xff]
  %v121 = vld [vmem:[%s1 + $0x320] sm:$0xff]
  %v122 = vld [vmem:[%s1 + $0x328] sm:$0xff]
  %v123 = vld [vmem:[%s1 + $0x330] sm:$0xff]
  %v124 = vld [vmem:[%s1 + $0x338] sm:$0xff]
  %v125 = vld [vmem:[%s1 + $0x340] sm:$0xff]
  %v126 = vld [vmem:[%s1 + $0x348] sm:$0xff]
  %v127 = vld [vmem:[%s1 + $0x350] sm:$0xff]
  %v128 = vld [vmem:[%s1 + $0x358] sm:$0xff]
  %v129 = vld [vmem:[%s1 + $0x360] sm:$0xff]
  %v130 = vld [vmem:[%s1 + $0x368] sm:$0xff]
  %v131 = vld [vmem:[%s1 + $0x370] sm:$0xff]
  %v132 = vld [vmem:[%s1 + $0x378] sm:$0xff]
  %v133 = vld [vmem:[%s1 + $0x380] sm:$0xff]
  %v134 = vld [vmem:[%s1 + $0x388] sm:$0xff]
  %v135 = vld [vmem:[%s1 + $0x390] sm:$0xff]
  %v136 = vld [vmem:[%s1 + $0x398] sm:$0xff]
  %v137 = vld [vmem:[%s1 + $0x3a0] sm:$0xff]
  %v138 = vld [vmem:[%s1 + $0x3a8] sm:$0xff]
  %v139 = vld [vmem:[%s1 + $0x3b0] sm:$0xff]
  %v140 = vld [vmem:[%s1 + $0x3b8] sm:$0xff]
  %v141 = vld [vmem:[%s1 + $0x3c0] sm:$0xff]
  %v142 = vld [vmem:[%s1 + $0x3c8] sm:$0xff]
  %v143 = vld [vmem:[%s1 + $0x3d0] sm:$0xff]
  %v144 = vld [vmem:[%s1 + $0x3d8] sm:$0xff]
  %v145 = vld [vmem:[%s1 + $0x3e0] sm:$0xff]
  %v146 = vld [vmem:[%s1 + $0x3e8] sm:$0xff]
  %v147 = vld [vmem:[%s1 + $0x3f0] sm:$0xff]
  %v148 = vld [vmem:[%s1 + $0x3f8] sm:$0xff]
  %v149 = vld [vmem:[%s2] sm:$0xff]
  %v151 = vlaneseq
  %v152 = vshrl.u32 %v151, 7
  %v153 = vsub.s32 0, %v152
  %v154 = vrot.slane %v149, %v153
  %v155 = vlaneseq
  %v156 = vshrl.u32 %v155, 7
  %v157 = vsub.s32 1, %v156
  %v158 = vrot.slane %v149, %v157
  %v159 = vlaneseq
  %v160 = vshrl.u32 %v159, 7
  %v161 = vsub.s32 2, %v160
  %v162 = vrot.slane %v149, %v161
  %v163 = vlaneseq
  %v164 = vshrl.u32 %v163, 7
  %v165 = vsub.s32 3, %v164
  %v166 = vrot.slane %v149, %v165
  %v167 = vlaneseq
  %v168 = vshrl.u32 %v167, 7
  %v169 = vsub.s32 4, %v168
  %v170 = vrot.slane %v149, %v169
  %v171 = vlaneseq
  %v172 = vshrl.u32 %v171, 7
  %v173 = vsub.s32 5, %v172
  %v174 = vrot.slane %v149, %v173
  %v175 = vlaneseq
  %v176 = vshrl.u32 %v175, 7
  %v177 = vsub.s32 6, %v176
  %v178 = vrot.slane %v149, %v177
  %v179 = vlaneseq
  %v180 = vshrl.u32 %v179, 7
  %v181 = vsub.s32 7, %v180
  %v182 = vrot.slane %v149, %v181
  %191 = vmatprep.subr.mxu0 %v22
  %192 = vmatpush1.msra.mxu0 %v21
  %193 = vmatprep.subr.mxu0 %v30
  %194 = vmatpush1.msra.mxu0 %v29
  %195 = vmatprep.subr.mxu0 %v38
  %196 = vmatpush1.msra.mxu0 %v37
  %197 = vmatprep.subr.mxu0 %v46
  %198 = vmatpush1.msra.mxu0 %v45
  %199 = vmatprep.subr.mxu0 %v54
  %200 = vmatpush1.msra.mxu0 %v53
  %201 = vmatprep.subr.mxu0 %v62
  %202 = vmatpush1.msra.mxu0 %v61
  %203 = vmatprep.subr.mxu0 %v70
  %204 = vmatpush1.msra.mxu0 %v69
  %205 = vmatprep.subr.mxu0 %v78
  %206 = vmatpush1.msra.mxu0 %v77
  %207 = vmatprep.subr.mxu0 %v86
  %208 = vmatpush1.msra.mxu0 %v85
  %209 = vmatprep.subr.mxu0 %v94
  %210 = vmatpush1.msra.mxu0 %v93
  %211 = vmatprep.subr.mxu0 %v102
  %212 = vmatpush1.msra.mxu0 %v101
  %213 = vmatprep.subr.mxu0 %v110
  %214 = vmatpush1.msra.mxu0 %v109
  %215 = vmatprep.subr.mxu0 %v118
  %216 = vmatpush1.msra.mxu0 %v117
  %217 = vmatprep.subr.mxu0 %v126
  %218 = vmatpush1.msra.mxu0 %v125
  %219 = vmatprep.subr.mxu0 %v134
  %220 = vmatpush1.msra.mxu0 %v133
  %221 = vmatprep.subr.mxu0 %v142
  %222 = vmatpush1.msra.mxu0 %v141
  %223 = vmatprep.subr.mxu0 0.0
  %224 = vmatpush1.msra.mxu0 0.0
  %225 = vmatprep.subr.mxu0 0.0
  %226 = vmatpush1.msra.mxu0 0.0
  %227 = vmatprep.subr.mxu0 0.0
  %228 = vmatpush1.msra.mxu0 0.0
  %229 = vmatprep.subr.mxu0 0.0
  %230 = vmatpush1.msra.mxu0 0.0
  %231 = vmatprep.subr.mxu0 0.0
  %232 = vmatpush1.msra.mxu0 0.0
  %233 = vmatprep.subr.mxu0 0.0
  %234 = vmatpush1.msra.mxu0 0.0
  %235 = vmatprep.subr.mxu0 0.0
  %236 = vmatpush1.msra.mxu0 0.0
  %237 = vmatprep.subr.mxu0 0.0
  %238 = vmatpush1.msra.mxu0 0.0
  %239 = vmatprep.subr.mxu0 0.0
  %240 = vmatpush1.msra.mxu0 0.0
  %241 = vmatprep.subr.mxu0 0.0
  %242 = vmatpush1.msra.mxu0 0.0
  %243 = vmatprep.subr.mxu0 0.0
  %244 = vmatpush1.msra.mxu0 0.0
  %245 = vmatprep.subr.mxu0 0.0
  %246 = vmatpush1.msra.mxu0 0.0
  %247 = vmatprep.subr.mxu0 0.0
  %248 = vmatpush1.msra.mxu0 0.0
  %249 = vmatprep.subr.mxu0 0.0
  %250 = vmatpush1.msra.mxu0 0.0
  %251 = vmatprep.subr.mxu0 0.0
  %252 = vmatpush1.msra.mxu0 0.0
  %253 = vmatprep.subr.mxu0 0.0
  %254 = vmatpush1.msra.mxu0 0.0
  %255 = vmatprep.mubr.f32.mxu0 0.0
  %256 = vmatmul.mubr.f32.gmra.mrb[0].mxu0 %v20
  %v257 = vpop.f32.mrb[0].mxu0
  %v258 = vadd.f32 %v154, %v257
  %v259 = vpop.f32.mrb[0].mxu0
  %v260 = vadd.f32 %v158, %v259
  %261 = vdwg.mxu0
  %262 = vmatprep.subr.mxu0 %v24
  %263 = vmatpush1.msra.mxu0 %v23
  %264 = vmatprep.subr.mxu0 %v32
  %265 = vmatpush1.msra.mxu0 %v31
  %266 = vmatprep.subr.mxu0 %v40
  %267 = vmatpush1.msra.mxu0 %v39
  %268 = vmatprep.subr.mxu0 %v48
  %269 = vmatpush1.msra.mxu0 %v47
  %270 = vmatprep.subr.mxu0 %v56
  %271 = vmatpush1.msra.mxu0 %v55
  %272 = vmatprep.subr.mxu0 %v64
  %273 = vmatpush1.msra.mxu0 %v63
  %274 = vmatprep.subr.mxu0 %v72
  %275 = vmatpush1.msra.mxu0 %v71
  %276 = vmatprep.subr.mxu0 %v80
  %277 = vmatpush1.msra.mxu0 %v79
  %278 = vmatprep.subr.mxu0 %v88
  %279 = vmatpush1.msra.mxu0 %v87
  %280 = vmatprep.subr.mxu0 %v96
  %281 = vmatpush1.msra.mxu0 %v95
  %282 = vmatprep.subr.mxu0 %v104
  %283 = vmatpush1.msra.mxu0 %v103
  %284 = vmatprep.subr.mxu0 %v112
  %285 = vmatpush1.msra.mxu0 %v111
  %286 = vmatprep.subr.mxu0 %v120
  %287 = vmatpush1.msra.mxu0 %v119
  %288 = vmatprep.subr.mxu0 %v128
  %289 = vmatpush1.msra.mxu0 %v127
  %290 = vmatprep.subr.mxu0 %v136
  %291 = vmatpush1.msra.mxu0 %v135
  %292 = vmatprep.subr.mxu0 %v144
  %293 = vmatpush1.msra.mxu0 %v143
  %294 = vmatprep.subr.mxu0 0.0
  %295 = vmatpush1.msra.mxu0 0.0
  %296 = vmatprep.subr.mxu0 0.0
  %297 = vmatpush1.msra.mxu0 0.0
  %298 = vmatprep.subr.mxu0 0.0
  %299 = vmatpush1.msra.mxu0 0.0
  %300 = vmatprep.subr.mxu0 0.0
  %301 = vmatpush1.msra.mxu0 0.0
  %302 = vmatprep.subr.mxu0 0.0
  %303 = vmatpush1.msra.mxu0 0.0
  %304 = vmatprep.subr.mxu0 0.0
  %305 = vmatpush1.msra.mxu0 0.0
  %306 = vmatprep.subr.mxu0 0.0
  %307 = vmatpush1.msra.mxu0 0.0
  %308 = vmatprep.subr.mxu0 0.0
  %309 = vmatpush1.msra.mxu0 0.0
  %310 = vmatprep.subr.mxu0 0.0
  %311 = vmatpush1.msra.mxu0 0.0
  %312 = vmatprep.subr.mxu0 0.0
  %313 = vmatpush1.msra.mxu0 0.0
  %314 = vmatprep.subr.mxu0 0.0
  %315 = vmatpush1.msra.mxu0 0.0
  %316 = vmatprep.subr.mxu0 0.0
  %317 = vmatpush1.msra.mxu0 0.0
  %318 = vmatprep.subr.mxu0 0.0
  %319 = vmatpush1.msra.mxu0 0.0
  %320 = vmatprep.subr.mxu0 0.0
  %321 = vmatpush1.msra.mxu0 0.0
  %322 = vmatprep.subr.mxu0 0.0
  %323 = vmatpush1.msra.mxu0 0.0
  %324 = vmatprep.subr.mxu0 0.0
  %325 = vmatpush1.msra.mxu0 0.0
  %326 = vmatprep.mubr.f32.mxu0 0.0
  %327 = vmatmul.mubr.f32.gmra.mrb[0].mxu0 %v20
  %v328 = vpop.f32.mrb[0].mxu0
  %v329 = vadd.f32 %v162, %v328
  %v330 = vpop.f32.mrb[0].mxu0
  %v331 = vadd.f32 %v166, %v330
  %332 = vdwg.mxu0
  %333 = vmatprep.subr.mxu0 %v26
  %334 = vmatpush1.msra.mxu0 %v25
  %335 = vmatprep.subr.mxu0 %v34
  %336 = vmatpush1.msra.mxu0 %v33
  %337 = vmatprep.subr.mxu0 %v42
  %338 = vmatpush1.msra.mxu0 %v41
  %339 = vmatprep.subr.mxu0 %v50
  %340 = vmatpush1.msra.mxu0 %v49
  %341 = vmatprep.subr.mxu0 %v58
  %342 = vmatpush1.msra.mxu0 %v57
  %343 = vmatprep.subr.mxu0 %v66
  %344 = vmatpush1.msra.mxu0 %v65
  %345 = vmatprep.subr.mxu0 %v74
  %346 = vmatpush1.msra.mxu0 %v73
  %347 = vmatprep.subr.mxu0 %v82
  %348 = vmatpush1.msra.mxu0 %v81
  %349 = vmatprep.subr.mxu0 %v90
  %350 = vmatpush1.msra.mxu0 %v89
  %351 = vmatprep.subr.mxu0 %v98
  %352 = vmatpush1.msra.mxu0 %v97
  %353 = vmatprep.subr.mxu0 %v106
  %354 = vmatpush1.msra.mxu0 %v105
  %355 = vmatprep.subr.mxu0 %v114
  %356 = vmatpush1.msra.mxu0 %v113
  %357 = vmatprep.subr.mxu0 %v122
  %358 = vmatpush1.msra.mxu0 %v121
  %359 = vmatprep.subr.mxu0 %v130
  %360 = vmatpush1.msra.mxu0 %v129
  %361 = vmatprep.subr.mxu0 %v138
  %362 = vmatpush1.msra.mxu0 %v137
  %363 = vmatprep.subr.mxu0 %v146
  %364 = vmatpush1.msra.mxu0 %v145
  %365 = vmatprep.subr.mxu0 0.0
  %366 = vmatpush1.msra.mxu0 0.0
  %367 = vmatprep.subr.mxu0 0.0
  %368 = vmatpush1.msra.mxu0 0.0
  %369 = vmatprep.subr.mxu0 0.0
  %370 = vmatpush1.msra.mxu0 0.0
  %371 = vmatprep.subr.mxu0 0.0
  %372 = vmatpush1.msra.mxu0 0.0
  %373 = vmatprep.subr.mxu0 0.0
  %374 = vmatpush1.msra.mxu0 0.0
  %375 = vmatprep.subr.mxu0 0.0
  %376 = vmatpush1.msra.mxu0 0.0
  %377 = vmatprep.subr.mxu0 0.0
  %378 = vmatpush1.msra.mxu0 0.0
  %379 = vmatprep.subr.mxu0 0.0
  %380 = vmatpush1.msra.mxu0 0.0
  %381 = vmatprep.subr.mxu0 0.0
  %382 = vmatpush1.msra.mxu0 0.0
  %383 = vmatprep.subr.mxu0 0.0
  %384 = vmatpush1.msra.mxu0 0.0
  %385 = vmatprep.subr.mxu0 0.0
  %386 = vmatpush1.msra.mxu0 0.0
  %387 = vmatprep.subr.mxu0 0.0
  %388 = vmatpush1.msra.mxu0 0.0
  %389 = vmatprep.subr.mxu0 0.0
  %390 = vmatpush1.msra.mxu0 0.0
  %391 = vmatprep.subr.mxu0 0.0
  %392 = vmatpush1.msra.mxu0 0.0
  %393 = vmatprep.subr.mxu0 0.0
  %394 = vmatpush1.msra.mxu0 0.0
  %395 = vmatprep.subr.mxu0 0.0
  %396 = vmatpush1.msra.mxu0 0.0
  %397 = vmatprep.mubr.f32.mxu0 0.0
  %398 = vmatmul.mubr.f32.gmra.mrb[0].mxu0 %v20
  %v399 = vpop.f32.mrb[0].mxu0
  %v400 = vadd.f32 %v170, %v399
  %v401 = vpop.f32.mrb[0].mxu0
  %v402 = vadd.f32 %v174, %v401
  %403 = vdwg.mxu0
  %404 = vmatprep.subr.mxu0 %v28
  %405 = vmatpush1.msra.mxu0 %v27
  %406 = vmatprep.subr.mxu0 %v36
  %407 = vmatpush1.msra.mxu0 %v35
  %408 = vmatprep.subr.mxu0 %v44
  %409 = vmatpush1.msra.mxu0 %v43
  %410 = vmatprep.subr.mxu0 %v52
  %411 = vmatpush1.msra.mxu0 %v51
  %412 = vmatprep.subr.mxu0 %v60
  %413 = vmatpush1.msra.mxu0 %v59
  %414 = vmatprep.subr.mxu0 %v68
  %415 = vmatpush1.msra.mxu0 %v67
  %416 = vmatprep.subr.mxu0 %v76
  %417 = vmatpush1.msra.mxu0 %v75
  %418 = vmatprep.subr.mxu0 %v84
  %419 = vmatpush1.msra.mxu0 %v83
  %420 = vmatprep.subr.mxu0 %v92
  %421 = vmatpush1.msra.mxu0 %v91
  %422 = vmatprep.subr.mxu0 %v100
  %423 = vmatpush1.msra.mxu0 %v99
  %424 = vmatprep.subr.mxu0 %v108
  %425 = vmatpush1.msra.mxu0 %v107
  %426 = vmatprep.subr.mxu0 %v116
  %427 = vmatpush1.msra.mxu0 %v115
  %428 = vmatprep.subr.mxu0 %v124
  %429 = vmatpush1.msra.mxu0 %v123
  %430 = vmatprep.subr.mxu0 %v132
  %431 = vmatpush1.msra.mxu0 %v131
  %432 = vmatprep.subr.mxu0 %v140
  %433 = vmatpush1.msra.mxu0 %v139
  %434 = vmatprep.subr.mxu0 %v148
  %435 = vmatpush1.msra.mxu0 %v147
  %436 = vmatprep.subr.mxu0 0.0
  %437 = vmatpush1.msra.mxu0 0.0
  %438 = vmatprep.subr.mxu0 0.0
  %439 = vmatpush1.msra.mxu0 0.0
  %440 = vmatprep.subr.mxu0 0.0
  %441 = vmatpush1.msra.mxu0 0.0
  %442 = vmatprep.subr.mxu0 0.0
  %443 = vmatpush1.msra.mxu0 0.0
  %444 = vmatprep.subr.mxu0 0.0
  %445 = vmatpush1.msra.mxu0 0.0
  %446 = vmatprep.subr.mxu0 0.0
  %447 = vmatpush1.msra.mxu0 0.0
  %448 = vmatprep.subr.mxu0 0.0
  %449 = vmatpush1.msra.mxu0 0.0
  %450 = vmatprep.subr.mxu0 0.0
  %451 = vmatpush1.msra.mxu0 0.0
  %452 = vmatprep.subr.mxu0 0.0
  %453 = vmatpush1.msra.mxu0 0.0
  %454 = vmatprep.subr.mxu0 0.0
  %455 = vmatpush1.msra.mxu0 0.0
  %456 = vmatprep.subr.mxu0 0.0
  %457 = vmatpush1.msra.mxu0 0.0
  %458 = vmatprep.subr.mxu0 0.0
  %459 = vmatpush1.msra.mxu0 0.0
  %460 = vmatprep.subr.mxu0 0.0
  %461 = vmatpush1.msra.mxu0 0.0
  %462 = vmatprep.subr.mxu0 0.0
  %463 = vmatpush1.msra.mxu0 0.0
  %464 = vmatprep.subr.mxu0 0.0
  %465 = vmatpush1.msra.mxu0 0.0
  %466 = vmatprep.subr.mxu0 0.0
  %467 = vmatpush1.msra.mxu0 0.0
  %468 = vmatprep.mubr.f32.mxu0 0.0
  %469 = vmatmul.mubr.f32.gmra.mrb[0].mxu0 %v20
  %v470 = vpop.f32.mrb[0].mxu0
  %v471 = vadd.f32 %v178, %v470
  %v472 = vpop.f32.mrb[0].mxu0
  %v473 = vadd.f32 %v182, %v472
  %474 = vdwg.mxu0
  %v475 = vmul.f32 %v258, 0.5
  %v476 = vmul.f32 %v260, 0.5
  %v477 = vmul.f32 %v329, 0.5
  %v478 = vmul.f32 %v331, 0.5
  %v479 = vmul.f32 %v400, 0.5
  %v480 = vmul.f32 %v402, 0.5
  %v481 = vmul.f32 %v471, 0.5
  %v482 = vmul.f32 %v473, 0.5
  %v483 = vmul.f32 %v258, 0.70710677
  %v484 = vmul.f32 %v260, 0.70710677
  %v485 = vmul.f32 %v329, 0.70710677
  %v486 = vmul.f32 %v331, 0.70710677
  %v487 = vmul.f32 %v400, 0.70710677
  %v488 = vmul.f32 %v402, 0.70710677
  %v489 = vmul.f32 %v471, 0.70710677
  %v490 = vmul.f32 %v473, 0.70710677
  %v491 = verf.f32.pop %v483
  %v492 = verf.f32.pop %v484
  %v493 = verf.f32.pop %v485
  %v494 = verf.f32.pop %v486
  %v495 = verf.f32.pop %v487
  %v496 = verf.f32.pop %v488
  %v497 = verf.f32.pop %v489
  %v498 = verf.f32.pop %v490
  %v499 = vadd.f32 %v491, 1.0
  %v500 = vadd.f32 %v492, 1.0
  %v501 = vadd.f32 %v493, 1.0
  %v502 = vadd.f32 %v494, 1.0
  %v503 = vadd.f32 %v495, 1.0
  %v504 = vadd.f32 %v496, 1.0
  %v505 = vadd.f32 %v497, 1.0
  %v506 = vadd.f32 %v498, 1.0
  %v507 = vmul.f32 %v475, %v499
  %v508 = vmul.f32 %v476, %v500
  %v509 = vmul.f32 %v477, %v501
  %v510 = vmul.f32 %v478, %v502
  %v511 = vmul.f32 %v479, %v503
  %v512 = vmul.f32 %v480, %v504
  %v513 = vmul.f32 %v481, %v505
  %v514 = vmul.f32 %v482, %v506
  %v515 = vld [vmem:[%s3] sm:$0xff]
  %v516 = vld [vmem:[%s3 + $0x8] sm:$0xff]
  %v517 = vld [vmem:[%s3 + $0x10] sm:$0xff]
  %v518 = vld [vmem:[%s3 + $0x18] sm:$0xff]
  %v519 = vld [vmem:[%s3 + $0x20] sm:$0xff]
  %v520 = vld [vmem:[%s3 + $0x28] sm:$0xff]
  %v521 = vld [vmem:[%s3 + $0x30] sm:$0xff]
  %v522 = vld [vmem:[%s3 + $0x38] sm:$0xff]
  %v523 = vld [vmem:[%s3 + $0x40] sm:$0xff]
  %v524 = vld [vmem:[%s3 + $0x48] sm:$0xff]
  %v525 = vld [vmem:[%s3 + $0x50] sm:$0xff]
  %v526 = vld [vmem:[%s3 + $0x58] sm:$0xff]
  %v527 = vld [vmem:[%s3 + $0x60] sm:$0xff]
  %v528 = vld [vmem:[%s3 + $0x68] sm:$0xff]
  %v529 = vld [vmem:[%s3 + $0x70] sm:$0xff]
  %v530 = vld [vmem:[%s3 + $0x78] sm:$0xff]
  %v531 = vld [vmem:[%s3 + $0x80] sm:$0xff]
  %v532 = vld [vmem:[%s3 + $0x88] sm:$0xff]
  %v533 = vld [vmem:[%s3 + $0x90] sm:$0xff]
  %v534 = vld [vmem:[%s3 + $0x98] sm:$0xff]
  %v535 = vld [vmem:[%s3 + $0xa0] sm:$0xff]
  %v536 = vld [vmem:[%s3 + $0xa8] sm:$0xff]
  %v537 = vld [vmem:[%s3 + $0xb0] sm:$0xff]
  %v538 = vld [vmem:[%s3 + $0xb8] sm:$0xff]
  %v539 = vld [vmem:[%s3 + $0xc0] sm:$0xff]
  %v540 = vld [vmem:[%s3 + $0xc8] sm:$0xff]
  %v541 = vld [vmem:[%s3 + $0xd0] sm:$0xff]
  %v542 = vld [vmem:[%s3 + $0xd8] sm:$0xff]
  %v543 = vld [vmem:[%s3 + $0xe0] sm:$0xff]
  %v544 = vld [vmem:[%s3 + $0xe8] sm:$0xff]
  %v545 = vld [vmem:[%s3 + $0xf0] sm:$0xff]
  %v546 = vld [vmem:[%s3 + $0xf8] sm:$0xff]
  %v547 = vld [vmem:[%s3 + $0x100] sm:$0xff]
  %v548 = vld [vmem:[%s3 + $0x108] sm:$0xff]
  %v549 = vld [vmem:[%s3 + $0x110] sm:$0xff]
  %v550 = vld [vmem:[%s3 + $0x118] sm:$0xff]
  %v551 = vld [vmem:[%s3 + $0x120] sm:$0xff]
  %v552 = vld [vmem:[%s3 + $0x128] sm:$0xff]
  %v553 = vld [vmem:[%s3 + $0x130] sm:$0xff]
  %v554 = vld [vmem:[%s3 + $0x138] sm:$0xff]
  %v555 = vld [vmem:[%s3 + $0x140] sm:$0xff]
  %v556 = vld [vmem:[%s3 + $0x148] sm:$0xff]
  %v557 = vld [vmem:[%s3 + $0x150] sm:$0xff]
  %v558 = vld [vmem:[%s3 + $0x158] sm:$0xff]
  %v559 = vld [vmem:[%s3 + $0x160] sm:$0xff]
  %v560 = vld [vmem:[%s3 + $0x168] sm:$0xff]
  %v561 = vld [vmem:[%s3 + $0x170] sm:$0xff]
  %v562 = vld [vmem:[%s3 + $0x178] sm:$0xff]
  %v563 = vld [vmem:[%s3 + $0x180] sm:$0xff]
  %v564 = vld [vmem:[%s3 + $0x188] sm:$0xff]
  %v565 = vld [vmem:[%s3 + $0x190] sm:$0xff]
  %v566 = vld [vmem:[%s3 + $0x198] sm:$0xff]
  %v567 = vld [vmem:[%s3 + $0x1a0] sm:$0xff]
  %v568 = vld [vmem:[%s3 + $0x1a8] sm:$0xff]
  %v569 = vld [vmem:[%s3 + $0x1b0] sm:$0xff]
  %v570 = vld [vmem:[%s3 + $0x1b8] sm:$0xff]
  %v571 = vld [vmem:[%s3 + $0x1c0] sm:$0xff]
  %v572 = vld [vmem:[%s3 + $0x1c8] sm:$0xff]
  %v573 = vld [vmem:[%s3 + $0x1d0] sm:$0xff]
  %v574 = vld [vmem:[%s3 + $0x1d8] sm:$0xff]
  %v575 = vld [vmem:[%s3 + $0x1e0] sm:$0xff]
  %v576 = vld [vmem:[%s3 + $0x1e8] sm:$0xff]
  %v577 = vld [vmem:[%s3 + $0x1f0] sm:$0xff]
  %v578 = vld [vmem:[%s3 + $0x1f8] sm:$0xff]
  %v579 = vld [vmem:[%s3 + $0x200] sm:$0xff]
  %v580 = vld [vmem:[%s3 + $0x208] sm:$0xff]
  %v581 = vld [vmem:[%s3 + $0x210] sm:$0xff]
  %v582 = vld [vmem:[%s3 + $0x218] sm:$0xff]
  %v583 = vld [vmem:[%s3 + $0x220] sm:$0xff]
  %v584 = vld [vmem:[%s3 + $0x228] sm:$0xff]
  %v585 = vld [vmem:[%s3 + $0x230] sm:$0xff]
  %v586 = vld [vmem:[%s3 + $0x238] sm:$0xff]
  %v587 = vld [vmem:[%s3 + $0x240] sm:$0xff]
  %v588 = vld [vmem:[%s3 + $0x248] sm:$0xff]
  %v589 = vld [vmem:[%s3 + $0x250] sm:$0xff]
  %v590 = vld [vmem:[%s3 + $0x258] sm:$0xff]
  %v591 = vld [vmem:[%s3 + $0x260] sm:$0xff]
  %v592 = vld [vmem:[%s3 + $0x268] sm:$0xff]
  %v593 = vld [vmem:[%s3 + $0x270] sm:$0xff]
  %v594 = vld [vmem:[%s3 + $0x278] sm:$0xff]
  %v595 = vld [vmem:[%s3 + $0x280] sm:$0xff]
  %v596 = vld [vmem:[%s3 + $0x288] sm:$0xff]
  %v597 = vld [vmem:[%s3 + $0x290] sm:$0xff]
  %v598 = vld [vmem:[%s3 + $0x298] sm:$0xff]
  %v599 = vld [vmem:[%s3 + $0x2a0] sm:$0xff]
  %v600 = vld [vmem:[%s3 + $0x2a8] sm:$0xff]
  %v601 = vld [vmem:[%s3 + $0x2b0] sm:$0xff]
  %v602 = vld [vmem:[%s3 + $0x2b8] sm:$0xff]
  %v603 = vld [vmem:[%s3 + $0x2c0] sm:$0xff]
  %v604 = vld [vmem:[%s3 + $0x2c8] sm:$0xff]
  %v605 = vld [vmem:[%s3 + $0x2d0] sm:$0xff]
  %v606 = vld [vmem:[%s3 + $0x2d8] sm:$0xff]
  %v607 = vld [vmem:[%s3 + $0x2e0] sm:$0xff]
  %v608 = vld [vmem:[%s3 + $0x2e8] sm:$0xff]
  %v609 = vld [vmem:[%s3 + $0x2f0] sm:$0xff]
  %v610 = vld [vmem:[%s3 + $0x2f8] sm:$0xff]
  %v611 = vld [vmem:[%s3 + $0x300] sm:$0xff]
  %v612 = vld [vmem:[%s3 + $0x308] sm:$0xff]
  %v613 = vld [vmem:[%s3 + $0x310] sm:$0xff]
  %v614 = vld [vmem:[%s3 + $0x318] sm:$0xff]
  %v615 = vld [vmem:[%s3 + $0x320] sm:$0xff]
  %v616 = vld [vmem:[%s3 + $0x328] sm:$0xff]
  %v617 = vld [vmem:[%s3 + $0x330] sm:$0xff]
  %v618 = vld [vmem:[%s3 + $0x338] sm:$0xff]
  %v619 = vld [vmem:[%s3 + $0x340] sm:$0xff]
  %v620 = vld [vmem:[%s3 + $0x348] sm:$0xff]
  %v621 = vld [vmem:[%s3 + $0x350] sm:$0xff]
  %v622 = vld [vmem:[%s3 + $0x358] sm:$0xff]
  %v623 = vld [vmem:[%s3 + $0x360] sm:$0xff]
  %v624 = vld [vmem:[%s3 + $0x368] sm:$0xff]
  %v625 = vld [vmem:[%s3 + $0x370] sm:$0xff]
  %v626 = vld [vmem:[%s3 + $0x378] sm:$0xff]
  %v627 = vld [vmem:[%s3 + $0x380] sm:$0xff]
  %v628 = vld [vmem:[%s3 + $0x388] sm:$0xff]
  %v629 = vld [vmem:[%s3 + $0x390] sm:$0xff]
  %v630 = vld [vmem:[%s3 + $0x398] sm:$0xff]
  %v631 = vld [vmem:[%s3 + $0x3a0] sm:$0xff]
  %v632 = vld [vmem:[%s3 + $0x3a8] sm:$0xff]
  %v633 = vld [vmem:[%s3 + $0x3b0] sm:$0xff]
  %v634 = vld [vmem:[%s3 + $0x3b8] sm:$0xff]
  %v635 = vld [vmem:[%s3 + $0x3c0] sm:$0xff]
  %v636 = vld [vmem:[%s3 + $0x3c8] sm:$0xff]
  %v637 = vld [vmem:[%s3 + $0x3d0] sm:$0xff]
  %v638 = vld [vmem:[%s3 + $0x3d8] sm:$0xff]
  %v639 = vld [vmem:[%s3 + $0x3e0] sm:$0xff]
  %v640 = vld [vmem:[%s3 + $0x3e8] sm:$0xff]
  %v641 = vld [vmem:[%s3 + $0x3f0] sm:$0xff]
  %v642 = vld [vmem:[%s3 + $0x3f8] sm:$0xff]
  %v643 = vld [vmem:[%s4] sm:$0x1]
  %v645 = vlaneseq
  %v646 = vshrl.u32 %v645, 7
  %v647 = vsub.s32 0, %v646
  %v648 = vrot.slane %v643, %v647
  %650 = vmatprep.subr.mxu0 0.0
  %651 = vmatpush1.msra.mxu0 %v515
  %652 = vmatprep.subr.mxu0 0.0
  %653 = vmatpush1.msra.mxu0 %v516
  %654 = vmatprep.subr.mxu0 0.0
  %655 = vmatpush1.msra.mxu0 %v517
  %656 = vmatprep.subr.mxu0 0.0
  %657 = vmatpush1.msra.mxu0 %v518
  %658 = vmatprep.subr.mxu0 0.0
  %659 = vmatpush1.msra.mxu0 %v519
  %660 = vmatprep.subr.mxu0 0.0
  %661 = vmatpush1.msra.mxu0 %v520
  %662 = vmatprep.subr.mxu0 0.0
  %663 = vmatpush1.msra.mxu0 %v521
  %664 = vmatprep.subr.mxu0 0.0
  %665 = vmatpush1.msra.mxu0 %v522
  %666 = vmatprep.subr.mxu0 0.0
  %667 = vmatpush1.msra.mxu0 %v523
  %668 = vmatprep.subr.mxu0 0.0
  %669 = vmatpush1.msra.mxu0 %v524
  %670 = vmatprep.subr.mxu0 0.0
  %671 = vmatpush1.msra.mxu0 %v525
  %672 = vmatprep.subr.mxu0 0.0
  %673 = vmatpush1.msra.mxu0 %v526
  %674 = vmatprep.subr.mxu0 0.0
  %675 = vmatpush1.msra.mxu0 %v527
  %676 = vmatprep.subr.mxu0 0.0
  %677 = vmatpush1.msra.mxu0 %v528
  %678 = vmatprep.subr.mxu0 0.0
  %679 = vmatpush1.msra.mxu0 %v529
  %680 = vmatprep.subr.mxu0 0.0
  %681 = vmatpush1.msra.mxu0 %v530
  %682 = vmatprep.subr.mxu0 0.0
  %683 = vmatpush1.msra.mxu0 %v531
  %684 = vmatprep.subr.mxu0 0.0
  %685 = vmatpush1.msra.mxu0 %v532
  %686 = vmatprep.subr.mxu0 0.0
  %687 = vmatpush1.msra.mxu0 %v533
  %688 = vmatprep.subr.mxu0 0.0
  %689 = vmatpush1.msra.mxu0 %v534
  %690 = vmatprep.subr.mxu0 0.0
  %691 = vmatpush1.msra.mxu0 %v535
  %692 = vmatprep.subr.mxu0 0.0
  %693 = vmatpush1.msra.mxu0 %v536
  %694 = vmatprep.subr.mxu0 0.0
  %695 = vmatpush1.msra.mxu0 %v537
  %696 = vmatprep.subr.mxu0 0.0
  %697 = vmatpush1.msra.mxu0 %v538
  %698 = vmatprep.subr.mxu0 0.0
  %699 = vmatpush1.msra.mxu0 %v539
  %700 = vmatprep.subr.mxu0 0.0
  %701 = vmatpush1.msra.mxu0 %v540
  %702 = vmatprep.subr.mxu0 0.0
  %703 = vmatpush1.msra.mxu0 %v541
  %704 = vmatprep.subr.mxu0 0.0
  %705 = vmatpush1.msra.mxu0 %v542
  %706 = vmatprep.subr.mxu0 0.0
  %707 = vmatpush1.msra.mxu0 %v543
  %708 = vmatprep.subr.mxu0 0.0
  %709 = vmatpush1.msra.mxu0 %v544
  %710 = vmatprep.subr.mxu0 0.0
  %711 = vmatpush1.msra.mxu0 %v545
  %712 = vmatprep.subr.mxu0 0.0
  %713 = vmatpush1.msra.mxu0 %v546
  %714 = vmatprep.mubr.f32.mxu0 %v508
  %715 = vmatmul.mubr.f32.gmra.mrb[0].mxu0 %v507
  %v716 = vpop.f32.mrb[0].mxu0
  %v717 = vadd.f32 %v648, %v716
  %v718 = vpop.f32.mrb[0].mxu0
  %719 = vdwg.mxu0
  %720 = vmatprep.subr.mxu0 0.0
  %721 = vmatpush1.msra.mxu0 %v547
  %722 = vmatprep.subr.mxu0 0.0
  %723 = vmatpush1.msra.mxu0 %v548
  %724 = vmatprep.subr.mxu0 0.0
  %725 = vmatpush1.msra.mxu0 %v549
  %726 = vmatprep.subr.mxu0 0.0
  %727 = vmatpush1.msra.mxu0 %v550
  %728 = vmatprep.subr.mxu0 0.0
  %729 = vmatpush1.msra.mxu0 %v551
  %730 = vmatprep.subr.mxu0 0.0
  %731 = vmatpush1.msra.mxu0 %v552
  %732 = vmatprep.subr.mxu0 0.0
  %733 = vmatpush1.msra.mxu0 %v553
  %734 = vmatprep.subr.mxu0 0.0
  %735 = vmatpush1.msra.mxu0 %v554
  %736 = vmatprep.subr.mxu0 0.0
  %737 = vmatpush1.msra.mxu0 %v555
  %738 = vmatprep.subr.mxu0 0.0
  %739 = vmatpush1.msra.mxu0 %v556
  %740 = vmatprep.subr.mxu0 0.0
  %741 = vmatpush1.msra.mxu0 %v557
  %742 = vmatprep.subr.mxu0 0.0
  %743 = vmatpush1.msra.mxu0 %v558
  %744 = vmatprep.subr.mxu0 0.0
  %745 = vmatpush1.msra.mxu0 %v559
  %746 = vmatprep.subr.mxu0 0.0
  %747 = vmatpush1.msra.mxu0 %v560
  %748 = vmatprep.subr.mxu0 0.0
  %749 = vmatpush1.msra.mxu0 %v561
  %750 = vmatprep.subr.mxu0 0.0
  %751 = vmatpush1.msra.mxu0 %v562
  %752 = vmatprep.subr.mxu0 0.0
  %753 = vmatpush1.msra.mxu0 %v563
  %754 = vmatprep.subr.mxu0 0.0
  %755 = vmatpush1.msra.mxu0 %v564
  %756 = vmatprep.subr.mxu0 0.0
  %757 = vmatpush1.msra.mxu0 %v565
  %758 = vmatprep.subr.mxu0 0.0
  %759 = vmatpush1.msra.mxu0 %v566
  %760 = vmatprep.subr.mxu0 0.0
  %761 = vmatpush1.msra.mxu0 %v567
  %762 = vmatprep.subr.mxu0 0.0
  %763 = vmatpush1.msra.mxu0 %v568
  %764 = vmatprep.subr.mxu0 0.0
  %765 = vmatpush1.msra.mxu0 %v569
  %766 = vmatprep.subr.mxu0 0.0
  %767 = vmatpush1.msra.mxu0 %v570
  %768 = vmatprep.subr.mxu0 0.0
  %769 = vmatpush1.msra.mxu0 %v571
  %770 = vmatprep.subr.mxu0 0.0
  %771 = vmatpush1.msra.mxu0 %v572
  %772 = vmatprep.subr.mxu0 0.0
  %773 = vmatpush1.msra.mxu0 %v573
  %774 = vmatprep.subr.mxu0 0.0
  %775 = vmatpush1.msra.mxu0 %v574
  %776 = vmatprep.subr.mxu0 0.0
  %777 = vmatpush1.msra.mxu0 %v575
  %778 = vmatprep.subr.mxu0 0.0
  %779 = vmatpush1.msra.mxu0 %v576
  %780 = vmatprep.subr.mxu0 0.0
  %781 = vmatpush1.msra.mxu0 %v577
  %782 = vmatprep.subr.mxu0 0.0
  %783 = vmatpush1.msra.mxu0 %v578
  %784 = vmatprep.mubr.f32.mxu0 %v510
  %785 = vmatmul.mubr.f32.gmra.mrb[0].mxu0 %v509
  %v786 = vpop.f32.mrb[0].mxu0
  %v787 = vadd.f32 %v717, %v786
  %v788 = vpop.f32.mrb[0].mxu0
  %789 = vdwg.mxu0
  %790 = vmatprep.subr.mxu0 0.0
  %791 = vmatpush1.msra.mxu0 %v579
  %792 = vmatprep.subr.mxu0 0.0
  %793 = vmatpush1.msra.mxu0 %v580
  %794 = vmatprep.subr.mxu0 0.0
  %795 = vmatpush1.msra.mxu0 %v581
  %796 = vmatprep.subr.mxu0 0.0
  %797 = vmatpush1.msra.mxu0 %v582
  %798 = vmatprep.subr.mxu0 0.0
  %799 = vmatpush1.msra.mxu0 %v583
  %800 = vmatprep.subr.mxu0 0.0
  %801 = vmatpush1.msra.mxu0 %v584
  %802 = vmatprep.subr.mxu0 0.0
  %803 = vmatpush1.msra.mxu0 %v585
  %804 = vmatprep.subr.mxu0 0.0
  %805 = vmatpush1.msra.mxu0 %v586
  %806 = vmatprep.subr.mxu0 0.0
  %807 = vmatpush1.msra.mxu0 %v587
  %808 = vmatprep.subr.mxu0 0.0
  %809 = vmatpush1.msra.mxu0 %v588
  %810 = vmatprep.subr.mxu0 0.0
  %811 = vmatpush1.msra.mxu0 %v589
  %812 = vmatprep.subr.mxu0 0.0
  %813 = vmatpush1.msra.mxu0 %v590
  %814 = vmatprep.subr.mxu0 0.0
  %815 = vmatpush1.msra.mxu0 %v591
  %816 = vmatprep.subr.mxu0 0.0
  %817 = vmatpush1.msra.mxu0 %v592
  %818 = vmatprep.subr.mxu0 0.0
  %819 = vmatpush1.msra.mxu0 %v593
  %820 = vmatprep.subr.mxu0 0.0
  %821 = vmatpush1.msra.mxu0 %v594
  %822 = vmatprep.subr.mxu0 0.0
  %823 = vmatpush1.msra.mxu0 %v595
  %824 = vmatprep.subr.mxu0 0.0
  %825 = vmatpush1.msra.mxu0 %v596
  %826 = vmatprep.subr.mxu0 0.0
  %827 = vmatpush1.msra.mxu0 %v597
  %828 = vmatprep.subr.mxu0 0.0
  %829 = vmatpush1.msra.mxu0 %v598
  %830 = vmatprep.subr.mxu0 0.0
  %831 = vmatpush1.msra.mxu0 %v599
  %832 = vmatprep.subr.mxu0 0.0
  %833 = vmatpush1.msra.mxu0 %v600
  %834 = vmatprep.subr.mxu0 0.0
  %835 = vmatpush1.msra.mxu0 %v601
  %836 = vmatprep.subr.mxu0 0.0
  %837 = vmatpush1.msra.mxu0 %v602
  %838 = vmatprep.subr.mxu0 0.0
  %839 = vmatpush1.msra.mxu0 %v603
  %840 = vmatprep.subr.mxu0 0.0
  %841 = vmatpush1.msra.mxu0 %v604
  %842 = vmatprep.subr.mxu0 0.0
  %843 = vmatpush1.msra.mxu0 %v605
  %844 = vmatprep.subr.mxu0 0.0
  %845 = vmatpush1.msra.mxu0 %v606
  %846 = vmatprep.subr.mxu0 0.0
  %847 = vmatpush1.msra.mxu0 %v607
  %848 = vmatprep.subr.mxu0 0.0
  %849 = vmatpush1.msra.mxu0 %v608
  %850 = vmatprep.subr.mxu0 0.0
  %851 = vmatpush1.msra.mxu0 %v609
  %852 = vmatprep.subr.mxu0 0.0
  %853 = vmatpush1.msra.mxu0 %v610
  %854 = vmatprep.mubr.f32.mxu0 %v512
  %855 = vmatmul.mubr.f32.gmra.mrb[0].mxu0 %v511
  %v856 = vpop.f32.mrb[0].mxu0
  %v857 = vadd.f32 %v787, %v856
  %v858 = vpop.f32.mrb[0].mxu0
  %859 = vdwg.mxu0
  %860 = vmatprep.subr.mxu0 0.0
  %861 = vmatpush1.msra.mxu0 %v611
  %862 = vmatprep.subr.mxu0 0.0
  %863 = vmatpush1.msra.mxu0 %v612
  %864 = vmatprep.subr.mxu0 0.0
  %865 = vmatpush1.msra.mxu0 %v613
  %866 = vmatprep.subr.mxu0 0.0
  %867 = vmatpush1.msra.mxu0 %v614
  %868 = vmatprep.subr.mxu0 0.0
  %869 = vmatpush1.msra.mxu0 %v615
  %870 = vmatprep.subr.mxu0 0.0
  %871 = vmatpush1.msra.mxu0 %v616
  %872 = vmatprep.subr.mxu0 0.0
  %873 = vmatpush1.msra.mxu0 %v617
  %874 = vmatprep.subr.mxu0 0.0
  %875 = vmatpush1.msra.mxu0 %v618
  %876 = vmatprep.subr.mxu0 0.0
  %877 = vmatpush1.msra.mxu0 %v619
  %878 = vmatprep.subr.mxu0 0.0
  %879 = vmatpush1.msra.mxu0 %v620
  %880 = vmatprep.subr.mxu0 0.0
  %881 = vmatpush1.msra.mxu0 %v621
  %882 = vmatprep.subr.mxu0 0.0
  %883 = vmatpush1.msra.mxu0 %v622
  %884 = vmatprep.subr.mxu0 0.0
  %885 = vmatpush1.msra.mxu0 %v623
  %886 = vmatprep.subr.mxu0 0.0
  %887 = vmatpush1.msra.mxu0 %v624
  %888 = vmatprep.subr.mxu0 0.0
  %889 = vmatpush1.msra.mxu0 %v625
  %890 = vmatprep.subr.mxu0 0.0
  %891 = vmatpush1.msra.mxu0 %v626
  %892 = vmatprep.subr.mxu0 0.0
  %893 = vmatpush1.msra.mxu0 %v627
  %894 = vmatprep.subr.mxu0 0.0
  %895 = vmatpush1.msra.mxu0 %v628
  %896 = vmatprep.subr.mxu0 0.0
  %897 = vmatpush1.msra.mxu0 %v629
  %898 = vmatprep.subr.mxu0 0.0
  %899 = vmatpush1.msra.mxu0 %v630
  %900 = vmatprep.subr.mxu0 0.0
  %901 = vmatpush1.msra.mxu0 %v631
  %902 = vmatprep.subr.mxu0 0.0
  %903 = vmatpush1.msra.mxu0 %v632
  %904 = vmatprep.subr.mxu0 0.0
  %905 = vmatpush1.msra.mxu0 %v633
  %906 = vmatprep.subr.mxu0 0.0
  %907 = vmatpush1.msra.mxu0 %v634
  %908 = vmatprep.subr.mxu0 0.0
  %909 = vmatpush1.msra.mxu0 %v635
  %910 = vmatprep.subr.mxu0 0.0
  %911 = vmatpush1.msra.mxu0 %v636
  %912 = vmatprep.subr.mxu0 0.0
  %913 = vmatpush1.msra.mxu0 %v637
  %914 = vmatprep.subr.mxu0 0.0
  %915 = vmatpush1.msra.mxu0 %v638
  %916 = vmatprep.subr.mxu0 0.0
  %917 = vmatpush1.msra.mxu0 %v639
  %918 = vmatprep.subr.mxu0 0.0
  %919 = vmatpush1.msra.mxu0 %v640
  %920 = vmatprep.subr.mxu0 0.0
  %921 = vmatpush1.msra.mxu0 %v641
  %922 = vmatprep.subr.mxu0 0.0
  %923 = vmatpush1.msra.mxu0 %v642
  %924 = vmatprep.mubr.f32.mxu0 %v514
  %925 = vmatmul.mubr.f32.gmra.mrb[0].mxu0 %v513
  %v926 = vpop.f32.mrb[0].mxu0
  %v927 = vadd.f32 %v857, %v926
  %v928 = vpop.f32.mrb[0].mxu0
  %929 = vdwg.mxu0
  %930 = vst [vmem:[%s5] sm:$0xff] %v927
  // Predicated region
  $region22: #{pose_regressor.1} parent=0 // pred_check
    _
  $region23: #{pose_regressor.1} parent=0 // pred_check_branch
    %932 = sbr.rel (0) target = $region25
  $region24: #{pose_regressor.1} parent=0 // pred_region
    _
  $region25: #{pose_regressor.1} parent=0 // pred_fallthru
    _
  // Predicated region
  $region26: #{pose_regressor.1} parent=0 // pred_check
    _
  $region27: #{pose_regressor.1} parent=0 // pred_check_branch
    %934 = sbr.rel (0) target = $region29
  $region28: #{pose_regressor.1} parent=0 // pred_region
    _
  $region29: #{pose_regressor.1} parent=0 // pred_fallthru
    _

</llo_original>
